<compile_context>
chip_gen: v7x
topology: tpu7x:2x2x1
jax: 0.10.0
libtpu: 0.0.40
codegen_flags: <defaults>
</compile_context>

<pallas_src>
import jax
import jax.numpy as jnp
from jax import lax
from jax.experimental import pallas as pl
from jax.experimental.pallas import tpu as pltpu

PAD_TOKEN_ID = 1          # BART pad token id (self.config.pad_token_id)
VOCAB = 128               # synthetic vocab size
HIDDEN = 32               # synthetic hidden size
NUM_CHOICES = 5           # hard-coded in the PyTorch module
DENOM_CORRECTION = 0.0    # args.denominator_correction_factor
IGNORE_INDEX = -100
LANE = 128                # TPU lane width (lane-dense output padding)


# ----------------------------------------------------------------------------
# Fused encoder kernel: matmul (MXU, bf16 in / f32 acc) + tanh (EUP) +
# attention-mask multiply (VPU) + masked mean pool, all in VMEM.
# ----------------------------------------------------------------------------
def _encoder_fused_kernel(emb2_ref, mask_ref, w_ref, h_ref, pool_ref):
    TR, Le = mask_ref.shape
    H = w_ref.shape[0]
    h = jnp.dot(emb2_ref[...], w_ref[...], preferred_element_type=jnp.float32)
    h = jnp.tanh(h).reshape(TR, Le, H)                     # f32, tile-aligned reshape
    mask = mask_ref[...]                                   # (TR, Le) f32
    h = h * mask[..., None]
    h_ref[...] = h                                         # encoder_last_hidden_state
    denom = jnp.maximum(jnp.sum(mask, axis=1, keepdims=True), 1.0)     # (TR, 1)
    pool_ref[...] = (jnp.sum(h, axis=1) / denom).astype(pool_ref.dtype)


def encoder_fused(enc_emb2, enc_mask, w_enc, *, row_block=None):
    """enc_emb2: (R*Le, H) bf16, enc_mask: (R, Le) f32, w_enc: (H, H) bf16."""
    R, Le = enc_mask.shape
    H = w_enc.shape[0]
    tr = R if row_block is None else row_block
    assert R % tr == 0
    return pl.pallas_call(
        _encoder_fused_kernel,
        out_shape=(jax.ShapeDtypeStruct((R, Le, H), jnp.float32),
                   jax.ShapeDtypeStruct((R, H), jnp.bfloat16)),
        grid=(R // tr,),
        in_specs=[
            pl.BlockSpec((tr * Le, H), lambda i: (i, 0)),   # flattened embeddings
            pl.BlockSpec((tr, Le), lambda i: (i, 0)),       # attention mask
            pl.BlockSpec((H, H), lambda i: (0, 0)),         # weight (VMEM-resident)
        ],
        out_specs=(pl.BlockSpec((tr, Le, H), lambda i: (i, 0, 0)),
                   pl.BlockSpec((tr, H), lambda i: (i, 0))),
        compiler_params=pltpu.CompilerParams(
            dimension_semantics=("parallel",),
            vmem_limit_bytes=32 * 1024 * 1024),
    )(enc_emb2, enc_mask, w_enc)


# ----------------------------------------------------------------------------
# Fused decoder-tail kernel: decoder proj + cross add + tanh + mask + LM head +
# per-token cross-entropy (reduction='none', ignore_index=-100) + score
#   score = -(sum / count_nonzero + denominator_correction_factor)  (pro_type='sqrt')
# Logits live only in VMEM/vregs; score stored lane-dense as (TR, 128).
# ----------------------------------------------------------------------------
def _decoder_fused_kernel(emb2_ref, mask_ref, pool_ref, labels_ref,
                          w_dec_ref, w_cross_ref, w_lm_ref, score_ref):
    TR, Ld = mask_ref.shape
    H = w_dec_ref.shape[0]
    V = w_lm_ref.shape[1]

    # cross-attention surrogate: one context vector per row
    cross = jnp.dot(pool_ref[...], w_cross_ref[...],
                    preferred_element_type=jnp.float32)               # (TR, H)
    proj = jnp.dot(emb2_ref[...], w_dec_ref[...],
                   preferred_element_type=jnp.float32).reshape(TR, Ld, H)
    dec_h = jnp.tanh(proj + cross[:, None, :])
    dec_h = dec_h * mask_ref[...][..., None]                          # (TR, Ld, H) f32

    # LM head — logits never leave on-chip memory.
    logits = jnp.dot(dec_h.reshape(TR * Ld, H).astype(jnp.bfloat16), w_lm_ref[...],
                     preferred_element_type=jnp.float32).reshape(TR, Ld, V)

    # per-token CE; labels are already shifted and padded with IGNORE_INDEX so the
    # extra final position contributes nothing (matches logits[:, :-1] / labels[:, 1:]).
    labels = labels_ref[...]                                          # (TR, Ld) i32
    m = jnp.max(logits, axis=-1)                                      # (TR, Ld)
    lse = m + jnp.log(jnp.sum(jnp.exp(logits - m[..., None]), axis=-1))
    vocab_iota = lax.broadcasted_iota(jnp.int32, (TR, Ld, V), 2)
    picked = jnp.sum(jnp.where(vocab_iota == labels[..., None], logits, 0.0), axis=-1)
    valid = labels != IGNORE_INDEX
    nll = jnp.where(valid, lse - picked, 0.0)                         # (TR, Ld)

    total = jnp.sum(nll, axis=1, keepdims=True)                       # (TR, 1)
    # torch.count_nonzero(loss) semantics: count CE values != 0 (not label validity)
    nonzero = jnp.sum((nll != 0.0).astype(jnp.float32), axis=1, keepdims=True)
    # guard 0/0 for an all-PAD row (torch would produce NaN here)
    score = -(total / jnp.maximum(nonzero, 1.0) + DENOM_CORRECTION)   # (TR, 1)
    score_ref[...] = jnp.broadcast_to(score, (TR, LANE))              # lane-dense store


def decoder_fused(dec_emb2, dec_mask, enc_pool, shift_labels,
                  w_dec, w_cross, w_lm, *, row_block=None):
    """dec_emb2: (R*Ld, H) bf16, dec_mask: (R, Ld) f32, enc_pool: (R, H) bf16,
    shift_labels: (R, Ld) i32, weights bf16. Returns (R, 128) f32 scores."""
    R, Ld = dec_mask.shape
    H = w_dec.shape[0]
    V = w_lm.shape[1]
    tr = R if row_block is None else row_block
    assert R % tr == 0
    return pl.pallas_call(
        _decoder_fused_kernel,
        out_shape=jax.ShapeDtypeStruct((R, LANE), jnp.float32),
        grid=(R // tr,),
        in_specs=[
            pl.BlockSpec((tr * Ld, H), lambda i: (i, 0)),   # flattened dec embeddings
            pl.BlockSpec((tr, Ld), lambda i: (i, 0)),       # decoder mask
            pl.BlockSpec((tr, H), lambda i: (i, 0)),        # pooled encoder state
            pl.BlockSpec((tr, Ld), lambda i: (i, 0)),       # shifted labels
            pl.BlockSpec((H, H), lambda i: (0, 0)),         # w_dec   (VMEM-resident)
            pl.BlockSpec((H, H), lambda i: (0, 0)),         # w_cross (VMEM-resident)
            pl.BlockSpec((H, V), lambda i: (0, 0)),         # w_lm    (VMEM-resident)
        ],
        out_specs=pl.BlockSpec((tr, LANE), lambda i: (i, 0)),
        compiler_params=pltpu.CompilerParams(
            dimension_semantics=("parallel",),
            vmem_limit_bytes=32 * 1024 * 1024),
    )(dec_emb2, dec_mask, enc_pool, shift_labels, w_dec, w_cross, w_lm)


# ----------------------------------------------------------------------------
# Synthetic deterministic parameters (stand-in for the pretrained BART weights)
# ----------------------------------------------------------------------------
def init_params(key):
    ks = jax.random.split(key, 5)
    return {
        "emb": 0.02 * jax.random.normal(ks[0], (VOCAB, HIDDEN), jnp.float32),
        "w_enc": 0.05 * jax.random.normal(ks[1], (HIDDEN, HIDDEN), jnp.float32),
        "w_dec": 0.05 * jax.random.normal(ks[2], (HIDDEN, HIDDEN), jnp.float32),
        "w_cross": 0.05 * jax.random.normal(ks[3], (HIDDEN, HIDDEN), jnp.float32),
        "w_lm": 0.05 * jax.random.normal(ks[4], (HIDDEN, VOCAB), jnp.float32),
    }


# ----------------------------------------------------------------------------
# Forward pass (evaluate_stage): returns (encoder_last_hidden_state, logits, targets)
# ----------------------------------------------------------------------------
def bart_mask_random_forward(params, inputs):
    (encode_inputs, encode_masks, decode_inputs, decode_masks,
     labels, encode_event_spans, targets) = inputs
    del encode_event_spans  # unused on the evaluate path

    batch_size = targets.shape[0]
    decode_len = decode_inputs.shape[-1]
    encode_len = encode_inputs.shape[-1]

    encode_inputs = encode_inputs.reshape(-1, encode_len)
    encode_masks = encode_masks.reshape(-1, encode_len).astype(jnp.float32)
    decode_inputs = decode_inputs.reshape(-1, decode_len)
    decode_masks = decode_masks.reshape(-1, decode_len).astype(jnp.float32)
    labels = labels.reshape(-1, decode_len)
    labels = jnp.where(labels == PAD_TOKEN_ID, IGNORE_INDEX, labels).astype(jnp.int32)

    R = encode_inputs.shape[0]  # batch * num_choices

    # shift labels and pad the last slot with IGNORE_INDEX so the kernel can
    # work on tile-aligned (R, decode_len) blocks (last position contributes 0)
    shift_labels = jnp.concatenate(
        [labels[:, 1:], jnp.full((R, 1), IGNORE_INDEX, jnp.int32)], axis=1)

    # bf16 operands at the pallas_call boundary; f32 accumulation inside kernels
    emb_bf = params["emb"].astype(jnp.bfloat16)
    enc_emb2 = jnp.take(emb_bf, encode_inputs.reshape(-1), axis=0)   # (R*Le, H)
    dec_emb2 = jnp.take(emb_bf, decode_inputs.reshape(-1), axis=0)   # (R*Ld, H)
    w_enc = params["w_enc"].astype(jnp.bfloat16)
    w_dec = params["w_dec"].astype(jnp.bfloat16)
    w_cross = params["w_cross"].astype(jnp.bfloat16)
    w_lm = params["w_lm"].astype(jnp.bfloat16)

    # ---- fused synthetic "BART" encoder ----
    encoder_last_hidden_state, enc_pool = encoder_fused(enc_emb2, encode_masks, w_enc)

    # ---- fused decoder tail (proj + cross + tanh + mask + LM head + CE + score) ----
    scores = decoder_fused(dec_emb2, decode_masks, enc_pool, shift_labels,
                           w_dec, w_cross, w_lm)                      # (R, 128)
    logits = scores[:, 0].reshape(batch_size, NUM_CHOICES)

    return encoder_last_hidden_state, logits, targets


if __name__ == "__main__":
    key = jax.random.PRNGKey(0)
    kp, k1, k2, k3, k4 = jax.random.split(key, 5)

    params = init_params(kp)

    batch, encode_len, decode_len = 2, 16, 8
    encode_inputs = jax.random.randint(k1, (batch, NUM_CHOICES, encode_len), 2, VOCAB, jnp.int32)
    encode_masks = jnp.ones((batch, NUM_CHOICES, encode_len), jnp.int32)
    decode_inputs = jax.random.randint(k2, (batch, NUM_CHOICES, decode_len), 2, VOCAB, jnp.int32)
    decode_masks = jnp.ones((batch, NUM_CHOICES, decode_len), jnp.int32)
    # labels: real tokens followed by PAD (which gets mapped to -100 / ignored)
    labels = jax.random.randint(k3, (batch, NUM_CHOICES, decode_len), 2, VOCAB, jnp.int32)
    labels = labels.at[..., -2:].set(PAD_TOKEN_ID)
    targets = jax.random.randint(k4, (batch,), 0, NUM_CHOICES, jnp.int32)
    encode_event_spans = None

    inputs = (encode_inputs, encode_masks, decode_inputs, decode_masks,
              labels, encode_event_spans, targets)

    enc_last, logits, tgt = bart_mask_random_forward(params, inputs)
    jax.block_until_ready((enc_last, logits, tgt))

    assert enc_last.shape == (batch * NUM_CHOICES, encode_len, HIDDEN)
    assert logits.shape == (batch, NUM_CHOICES)
    assert tgt.shape == (batch,)
    assert bool(jnp.all(jnp.isfinite(logits)))
    print("KERNEL_OK")
</pallas_src>

<mosaic_0001>
module attributes {stable_mosaic.version = 11 : i64} {
  func.func @_encoder_fused_kernel(%arg0: i32, %arg1: memref<160x32xbf16, #tpu.memory_space<vmem>>, %arg2: memref<10x16xf32, #tpu.memory_space<vmem>>, %arg3: memref<32x32xbf16, #tpu.memory_space<vmem>>, %arg4: memref<10x16x32xf32, #tpu.memory_space<vmem>>, %arg5: memref<10x32xbf16, #tpu.memory_space<vmem>>) attributes {dimension_semantics = [#tpu.dimension_semantics<parallel>], iteration_bounds = array<i64: 1>, scalar_prefetch = 0 : i64, scratch_operands = 0 : i64, tpu.core_type = #tpu.core_type<tc>, window_params = [{transform_indices = @transform_0, window_bounds = array<i64: 160, 32>}, {transform_indices = @transform_1, window_bounds = array<i64: 10, 16>}, {pipeline_mode = #tpu.pipeline_mode<synchronous>, transform_indices = @transform_2, window_bounds = array<i64: 32, 32>}, {transform_indices = @transform_3, window_bounds = array<i64: 10, 16, 32>}, {transform_indices = @transform_4, window_bounds = array<i64: 10, 32>}]} {
    %c0 = arith.constant 0 : index
    %c0_0 = arith.constant 0 : index
    %0 = vector.load %arg1[%c0, %c0_0] : memref<160x32xbf16, #tpu.memory_space<vmem>>, vector<160x32xbf16>
    %c0_1 = arith.constant 0 : index
    %c0_2 = arith.constant 0 : index
    %1 = vector.load %arg3[%c0_1, %c0_2] : memref<32x32xbf16, #tpu.memory_space<vmem>>, vector<32x32xbf16>
    %cst = arith.constant dense<0.000000e+00> : vector<160x32xf32>
    %2 = tpu.matmul %0, %1, %cst {dimension_numbers = #tpu.dot_dimension_numbers<[1], [0], [0], [1], [0, 0, 1, 1], [], []>} : vector<160x32xbf16>, vector<32x32xbf16>, vector<160x32xf32> -> vector<160x32xf32>
    %3 = math.tanh %2 : vector<160x32xf32>
    %4 = vector.shape_cast %3 : vector<160x32xf32> to vector<10x16x32xf32>
    %c0_3 = arith.constant 0 : index
    %c0_4 = arith.constant 0 : index
    %5 = vector.load %arg2[%c0_3, %c0_4] : memref<10x16xf32, #tpu.memory_space<vmem>>, vector<10x16xf32>
    %6 = vector.shape_cast %5 : vector<10x16xf32> to vector<10x16x1xf32>
    %7 = vector.broadcast %6 : vector<10x16x1xf32> to vector<10x16x32xf32>
    %8 = arith.mulf %4, %7 : vector<10x16x32xf32>
    %c0_5 = arith.constant 0 : index
    %c0_6 = arith.constant 0 : index
    %c0_7 = arith.constant 0 : index
    %9 = vector.load %arg4[%c0_5, %c0_6, %c0_7] : memref<10x16x32xf32, #tpu.memory_space<vmem>>, vector<10x16x32xf32>
    tpu.vector_store %arg4[%c0_5, %c0_6, %c0_7], %8 {strides = array<i32>} : memref<10x16x32xf32, #tpu.memory_space<vmem>>, vector<10x16x32xf32>,
    %cst_8 = arith.constant dense<0.000000e+00> : vector<10xf32>
    %10 = vector.multi_reduction <add>, %5, %cst_8 [1] : vector<10x16xf32> to vector<10xf32>
    %11 = vector.shape_cast %10 : vector<10xf32> to vector<10x1xf32>
    %cst_9 = arith.constant 1.000000e+00 : f32
    %12 = vector.broadcast %cst_9 : f32 to vector<10x1xf32>
    %13 = arith.maximumf %11, %12 : vector<10x1xf32>
    %cst_10 = arith.constant dense<0.000000e+00> : vector<10x32xf32>
    %14 = vector.multi_reduction <add>, %8, %cst_10 [1] : vector<10x16x32xf32> to vector<10x32xf32>
    %15 = vector.broadcast %13 : vector<10x1xf32> to vector<10x32xf32>
    %16 = arith.divf %14, %15 : vector<10x32xf32>
    %17 = arith.truncf %16 : vector<10x32xf32> to vector<10x32xbf16>
    %c0_11 = arith.constant 0 : index
    %c0_12 = arith.constant 0 : index
    %18 = vector.load %arg5[%c0_11, %c0_12] : memref<10x32xbf16, #tpu.memory_space<vmem>>, vector<10x32xbf16>
    tpu.vector_store %arg5[%c0_11, %c0_12], %17 {strides = array<i32>} : memref<10x32xbf16, #tpu.memory_space<vmem>>, vector<10x32xbf16>,
    return
  }
  func.func @transform_0(%arg0: i32) -> (i32, i32) {
    %c0_i32 = arith.constant 0 : i32
    %c0_i32_0 = arith.constant 0 : i32
    return %arg0, %c0_i32 : i32, i32
  }
  func.func @transform_1(%arg0: i32) -> (i32, i32) {
    %c0_i32 = arith.constant 0 : i32
    %c0_i32_0 = arith.constant 0 : i32
    return %arg0, %c0_i32 : i32, i32
  }
  func.func @transform_2(%arg0: i32) -> (i32, i32) {
    %c0_i32 = arith.constant 0 : i32
    %c0_i32_0 = arith.constant 0 : i32
    %c0_i32_1 = arith.constant 0 : i32
    return %c0_i32, %c0_i32_0 : i32, i32
  }
  func.func @transform_3(%arg0: i32) -> (i32, i32, i32) {
    %c0_i32 = arith.constant 0 : i32
    %c0_i32_0 = arith.constant 0 : i32
    %c0_i32_1 = arith.constant 0 : i32
    return %arg0, %c0_i32, %c0_i32_0 : i32, i32, i32
  }
  func.func @transform_4(%arg0: i32) -> (i32, i32) {
    %c0_i32 = arith.constant 0 : i32
    %c0_i32_0 = arith.constant 0 : i32
    return %arg0, %c0_i32 : i32, i32
  }
}

</mosaic_0001>

<llo_original>
// kernel: tpu_custom_call.1
$region0: #{tpu_custom_call.1}
  #allocation0 [shape = 'u32[]', space=smem, size = 0x4, offset = 0x4, fixed_abs, tag = 'smem constant byte address 0x4 - core index']
  #allocation1 [shape = 'u32[144,128]{1,0:T(1,128)}', space=vmem, size = 0x12000, scoped, tag = 'internal scratch']
  %s0 = inlined_call_operand.vmem [shape: bf16[160,32], index: 0, kind: input, shape index: {}]
  %s1 = inlined_call_operand.vmem [shape: f32[10,16], index: 1, kind: input, shape index: {}]
  %s2 = inlined_call_operand.vmem [shape: bf16[32,32], index: 2, kind: input, shape index: {}]
  %s3 = inlined_call_operand.hbm [shape: f32[10,16,32], index: 3, kind: output, shape index: {0}]
  %s4 = inlined_call_operand.hbm [shape: bf16[10,32], index: 4, kind: output, shape index: {1}]
  %5 = xla_tuple %s3, %s4
  %s6 = sld [smem:[#allocation0]]
  $region30: #{tpu_custom_call.1} parent=0
    _
  %s8 = ssub.s32 1, %s6
  %s9 = scalar_select 0, %s8, %s6
  $region1: #{tpu_custom_call.1} parent=0
    #allocation2 [shape = 'u8[81920]{0}', space=vmem, size = 0x14000, scoped, tag = 'output window, operand 0, single buffered']
    #allocation3 [shape = 's32[1]{0}', space=sflag, size = 0x4, scoped, tag = 'scoped memory for tpu_custom_call.1']
    #allocation4 [shape = 'u8[4096]{0}', space=vmem, size = 0x1000, scoped, tag = 'output window, operand 1, single buffered']
    #allocation5 [shape = 's32[1]{0}', space=sflag, size = 0x4, scoped, tag = 'scoped memory for tpu_custom_call.1']
    %10 = vsyncpa [#allocation3], 0
    %11 = vsyncpa [#allocation5], 0
    // Predicated region
    $region2: #{tpu_custom_call.1} parent=1 // pred_check
      _
    $region3: #{tpu_custom_call.1} parent=1 // pred_check_branch
      %13 = sbr.rel (0) target = $region5
    $region4: #{tpu_custom_call.1} parent=1 // pred_region
      _
    $region5: #{tpu_custom_call.1} parent=1 // pred_fallthru
      _
    // Predicated region
    $region6: #{tpu_custom_call.1} parent=1 // pred_check
      _
    $region7: #{tpu_custom_call.1} parent=1 // pred_check_branch
      %15 = sbr.rel (0) target = $region9
    $region8: #{tpu_custom_call.1} parent=1 // pred_region
      _
    $region9: #{tpu_custom_call.1} parent=1 // pred_fallthru
      _
    // Predicated region
    $region10: #{tpu_custom_call.1} parent=1 // pred_check
      _
    $region11: #{tpu_custom_call.1} parent=1 // pred_check_branch
      %17 = sbr.rel (0) target = $region13
    $region12: #{tpu_custom_call.1} parent=1 // pred_region
      _
    $region13: #{tpu_custom_call.1} parent=1 // pred_fallthru
      _
    %v19 = vld [vmem:[%s0] sm:$0xf]
    %v20 = vld [vmem:[%s0 + $0x4] sm:$0xf]
    %v21 = vld [vmem:[%s0 + $0x8] sm:$0xf]
    %v22 = vld [vmem:[%s0 + $0xc] sm:$0xf]
    %v23 = vld [vmem:[%s0 + $0x10] sm:$0xf]
    %v24 = vld [vmem:[%s0 + $0x14] sm:$0xf]
    %v25 = vld [vmem:[%s0 + $0x18] sm:$0xf]
    %v26 = vld [vmem:[%s0 + $0x1c] sm:$0xf]
    %v27 = vld [vmem:[%s0 + $0x20] sm:$0xf]
    %v28 = vld [vmem:[%s0 + $0x24] sm:$0xf]
    %v29 = vld [vmem:[%s0 + $0x28] sm:$0xf]
    %v30 = vld [vmem:[%s0 + $0x2c] sm:$0xf]
    %v31 = vld [vmem:[%s0 + $0x30] sm:$0xf]
    %v32 = vld [vmem:[%s0 + $0x34] sm:$0xf]
    %v33 = vld [vmem:[%s0 + $0x38] sm:$0xf]
    %v34 = vld [vmem:[%s0 + $0x3c] sm:$0xf]
    %v35 = vld [vmem:[%s0 + $0x40] sm:$0xf]
    %v36 = vld [vmem:[%s0 + $0x44] sm:$0xf]
    %v37 = vld [vmem:[%s0 + $0x48] sm:$0xf]
    %v38 = vld [vmem:[%s0 + $0x4c] sm:$0xf]
    %v39 = vld [vmem:[%s2] sm:$0xf]
    %v40 = vld [vmem:[%s2 + $0x4] sm:$0xf]
    %v41 = vld [vmem:[%s2 + $0x8] sm:$0xf]
    %v42 = vld [vmem:[%s2 + $0xc] sm:$0xf]
    %v63 = vunpack.c.l.b16 %v19
    %v64 = vunpack.c.l.b16 %v20
    %v65 = vunpack.c.l.b16 %v21
    %v66 = vunpack.c.l.b16 %v22
    %v67 = vunpack.c.l.b16 %v23
    %v68 = vunpack.c.l.b16 %v24
    %v69 = vunpack.c.l.b16 %v25
    %v70 = vunpack.c.l.b16 %v26
    %v71 = vunpack.c.l.b16 %v27
    %v72 = vunpack.c.l.b16 %v28
    %v73 = vunpack.c.l.b16 %v29
    %v74 = vunpack.c.l.b16 %v30
    %v75 = vunpack.c.l.b16 %v31
    %v76 = vunpack.c.l.b16 %v32
    %v77 = vunpack.c.l.b16 %v33
    %v78 = vunpack.c.l.b16 %v34
    %v79 = vunpack.c.l.b16 %v35
    %v80 = vunpack.c.l.b16 %v36
    %v81 = vunpack.c.l.b16 %v37
    %v82 = vunpack.c.l.b16 %v38
    %v83 = vpack.c.b16 %v64, %v63
    %v84 = vpack.c.b16 %v66, %v65
    %v85 = vpack.c.b16 %v68, %v67
    %v86 = vpack.c.b16 %v70, %v69
    %v87 = vpack.c.b16 %v72, %v71
    %v88 = vpack.c.b16 %v74, %v73
    %v89 = vpack.c.b16 %v76, %v75
    %v90 = vpack.c.b16 %v78, %v77
    %v91 = vpack.c.b16 %v80, %v79
    %v92 = vpack.c.b16 %v82, %v81
    %v97 = vunpack.c.l.b16 %v39
    %v98 = vunpack.c.l.b16 %v40
    %v99 = vunpack.c.l.b16 %v41
    %v100 = vunpack.c.l.b16 %v42
    %v101 = vpack.c.b16 %v98, %v97
    %v102 = vpack.c.b16 %v100, %v99
    %vm105 = vcmask 261120
    %v107 = vsel %vm105, %v83, 0
    %v110 = vsel %vm105, %v84, 0
    %v113 = vsel %vm105, %v85, 0
    %v116 = vsel %vm105, %v86, 0
    %v119 = vsel %vm105, %v87, 0
    %v122 = vsel %vm105, %v88, 0
    %v125 = vsel %vm105, %v89, 0
    %v128 = vsel %vm105, %v90, 0
    %v131 = vsel %vm105, %v91, 0
    %v134 = vsel %vm105, %v92, 0
    %136 = vmatprep.subr.bf16.mxu0 0
    %137 = vmatpush1.bf16.msra.mxu0 %v101
    %138 = vmatprep.subr.bf16.mxu0 0
    %139 = vmatpush1.bf16.msra.mxu0 %v102
    %140 = vmatprep.subr.bf16.mxu0 0
    %141 = vmatpush1.bf16.msra.mxu0 0
    %142 = vmatprep.subr.bf16.mxu0 0
    %143 = vmatpush1.bf16.msra.mxu0 0
    %144 = vmatprep.subr.bf16.mxu0 0
    %145 = vmatpush1.bf16.msra.mxu0 0
    %146 = vmatprep.subr.bf16.mxu0 0
    %147 = vmatpush1.bf16.msra.mxu0 0
    %148 = vmatprep.subr.bf16.mxu0 0
    %149 = vmatpush1.bf16.msra.mxu0 0
    %150 = vmatprep.subr.bf16.mxu0 0
    %151 = vmatpush1.bf16.msra.mxu0 0
    %152 = vmatprep.subr.bf16.mxu0 0
    %153 = vmatpush1.bf16.msra.mxu0 0
    %154 = vmatprep.subr.bf16.mxu0 0
    %155 = vmatpush1.bf16.msra.mxu0 0
    %156 = vmatprep.subr.bf16.mxu0 0
    %157 = vmatpush1.bf16.msra.mxu0 0
    %158 = vmatprep.subr.bf16.mxu0 0
    %159 = vmatpush1.bf16.msra.mxu0 0
    %160 = vmatprep.subr.bf16.mxu0 0
    %161 = vmatpush1.bf16.msra.mxu0 0
    %162 = vmatprep.subr.bf16.mxu0 0
    %163 = vmatpush1.bf16.msra.mxu0 0
    %164 = vmatprep.subr.bf16.mxu0 0
    %165 = vmatpush1.bf16.msra.mxu0 0
    %166 = vmatprep.subr.bf16.mxu0 0
    %167 = vmatpush1.bf16.msra.mxu0 0
    %168 = vmatprep.mubr.bf16.mxu0 0
    %169 = vmatmul.mubr.bf16.gmra.mrb[0].mxu0 %v107
    %v170 = vpop.f32.mrb[0].mxu0
    %v171 = vadd.f32 0.0, %v170
    %v172 = vpop.f32.mrb[0].mxu0
    %v173 = vpop.f32.mrb[0].mxu0
    %v174 = vadd.f32 0.0, %v173
    %v175 = vpop.f32.mrb[0].mxu0
    %176 = vmatprep.mubr.bf16.mxu0 0
    %177 = vmatmul.mubr.bf16.gmra.mrb[0].mxu0 %v110
    %v178 = vpop.f32.mrb[0].mxu0
    %v179 = vadd.f32 0.0, %v178
    %v180 = vpop.f32.mrb[0].mxu0
    %v181 = vpop.f32.mrb[0].mxu0
    %v182 = vadd.f32 0.0, %v181
    %v183 = vpop.f32.mrb[0].mxu0
    %184 = vmatprep.mubr.bf16.mxu0 0
    %185 = vmatmul.mubr.bf16.gmra.mrb[0].mxu0 %v113
    %v186 = vpop.f32.mrb[0].mxu0
    %v187 = vadd.f32 0.0, %v186
    %v188 = vpop.f32.mrb[0].mxu0
    %v189 = vpop.f32.mrb[0].mxu0
    %v190 = vadd.f32 0.0, %v189
    %v191 = vpop.f32.mrb[0].mxu0
    %192 = vmatprep.mubr.bf16.mxu0 0
    %193 = vmatmul.mubr.bf16.gmra.mrb[0].mxu0 %v116
    %v194 = vpop.f32.mrb[0].mxu0
    %v195 = vadd.f32 0.0, %v194
    %v196 = vpop.f32.mrb[0].mxu0
    %v197 = vpop.f32.mrb[0].mxu0
    %v198 = vadd.f32 0.0, %v197
    %v199 = vpop.f32.mrb[0].mxu0
    %200 = vmatprep.mubr.bf16.mxu0 0
    %201 = vmatmul.mubr.bf16.gmra.mrb[0].mxu0 %v119
    %v202 = vpop.f32.mrb[0].mxu0
    %v203 = vadd.f32 0.0, %v202
    %v204 = vpop.f32.mrb[0].mxu0
    %v205 = vpop.f32.mrb[0].mxu0
    %v206 = vadd.f32 0.0, %v205
    %v207 = vpop.f32.mrb[0].mxu0
    %208 = vmatprep.mubr.bf16.mxu0 0
    %209 = vmatmul.mubr.bf16.gmra.mrb[0].mxu0 %v122
    %v210 = vpop.f32.mrb[0].mxu0
    %v211 = vadd.f32 0.0, %v210
    %v212 = vpop.f32.mrb[0].mxu0
    %v213 = vpop.f32.mrb[0].mxu0
    %v214 = vadd.f32 0.0, %v213
    %v215 = vpop.f32.mrb[0].mxu0
    %216 = vmatprep.mubr.bf16.mxu0 0
    %217 = vmatmul.mubr.bf16.gmra.mrb[0].mxu0 %v125
    %v218 = vpop.f32.mrb[0].mxu0
    %v219 = vadd.f32 0.0, %v218
    %v220 = vpop.f32.mrb[0].mxu0
    %v221 = vpop.f32.mrb[0].mxu0
    %v222 = vadd.f32 0.0, %v221
    %v223 = vpop.f32.mrb[0].mxu0
    %224 = vmatprep.mubr.bf16.mxu0 0
    %225 = vmatmul.mubr.bf16.gmra.mrb[0].mxu0 %v128
    %v226 = vpop.f32.mrb[0].mxu0
    %v227 = vadd.f32 0.0, %v226
    %v228 = vpop.f32.mrb[0].mxu0
    %v229 = vpop.f32.mrb[0].mxu0
    %v230 = vadd.f32 0.0, %v229
    %v231 = vpop.f32.mrb[0].mxu0
    %232 = vmatprep.mubr.bf16.mxu0 0
    %233 = vmatmul.mubr.bf16.gmra.mrb[0].mxu0 %v131
    %v234 = vpop.f32.mrb[0].mxu0
    %v235 = vadd.f32 0.0, %v234
    %v236 = vpop.f32.mrb[0].mxu0
    %v237 = vpop.f32.mrb[0].mxu0
    %v238 = vadd.f32 0.0, %v237
    %v239 = vpop.f32.mrb[0].mxu0
    %240 = vmatprep.mubr.bf16.mxu0 0
    %241 = vmatmul.mubr.bf16.gmra.mrb[0].mxu0 %v134
    %v242 = vpop.f32.mrb[0].mxu0
    %v243 = vadd.f32 0.0, %v242
    %v244 = vpop.f32.mrb[0].mxu0
    %v245 = vpop.f32.mrb[0].mxu0
    %v246 = vadd.f32 0.0, %v245
    %v247 = vpop.f32.mrb[0].mxu0
    %248 = vdwg.mxu0
    %v249 = vtanh.pop %v171
    %v250 = vtanh.pop %v174
    %v251 = vtanh.pop %v179
    %v252 = vtanh.pop %v182
    %v253 = vtanh.pop %v187
    %v254 = vtanh.pop %v190
    %v255 = vtanh.pop %v195
    %v256 = vtanh.pop %v198
    %v257 = vtanh.pop %v203
    %v258 = vtanh.pop %v206
    %v259 = vtanh.pop %v211
    %v260 = vtanh.pop %v214
    %v261 = vtanh.pop %v219
    %v262 = vtanh.pop %v222
    %v263 = vtanh.pop %v227
    %v264 = vtanh.pop %v230
    %v265 = vtanh.pop %v235
    %v266 = vtanh.pop %v238
    %v267 = vtanh.pop %v243
    %v268 = vtanh.pop %v246
    %v269 = vld [vmem:[%s1] sm:$0xff]
    %v270 = vld [vmem:[%s1 + $0x8] sm:$0x3]
    %v271 = vlaneseq
    %v272 = vshrl.u32 %v271, 7
    %v273 = vsub.s32 0, %v272
    %v274 = vrot.slane %v269, %v273
    %276 = vbcast.lane.b32.xlu0 %v274, 256
    %v277 = vpop.permute.xlu0 %276
    %s279 = sor.u32 256, 8
    %280 = vbcast.lane.b32.xlu0 %v274, %s279
    %v281 = vpop.permute.xlu0 %280
    %v282 = vlaneseq
    %v283 = vshrl.u32 %v282, 7
    %v284 = vsub.s32 1, %v283
    %v285 = vrot.slane %v269, %v284
    %287 = vbcast.lane.b32.xlu0 %v285, 256
    %v288 = vpop.permute.xlu0 %287
    %s290 = sor.u32 256, 8
    %291 = vbcast.lane.b32.xlu0 %v285, %s290
    %v292 = vpop.permute.xlu0 %291
    %v293 = vlaneseq
    %v294 = vshrl.u32 %v293, 7
    %v295 = vsub.s32 2, %v294
    %v296 = vrot.slane %v269, %v295
    %298 = vbcast.lane.b32.xlu0 %v296, 256
    %v299 = vpop.permute.xlu0 %298
    %s301 = sor.u32 256, 8
    %302 = vbcast.lane.b32.xlu0 %v296, %s301
    %v303 = vpop.permute.xlu0 %302
    %v304 = vlaneseq
    %v305 = vshrl.u32 %v304, 7
    %v306 = vsub.s32 3, %v305
    %v307 = vrot.slane %v269, %v306
    %309 = vbcast.lane.b32.xlu0 %v307, 256
    %v310 = vpop.permute.xlu0 %309
    %s312 = sor.u32 256, 8
    %313 = vbcast.lane.b32.xlu0 %v307, %s312
    %v314 = vpop.permute.xlu0 %313
    %v315 = vlaneseq
    %v316 = vshrl.u32 %v315, 7
    %v317 = vsub.s32 4, %v316
    %v318 = vrot.slane %v269, %v317
    %320 = vbcast.lane.b32.xlu0 %v318, 256
    %v321 = vpop.permute.xlu0 %320
    %s323 = sor.u32 256, 8
    %324 = vbcast.lane.b32.xlu0 %v318, %s323
    %v325 = vpop.permute.xlu0 %324
    %v326 = vlaneseq
    %v327 = vshrl.u32 %v326, 7
    %v328 = vsub.s32 5, %v327
    %v329 = vrot.slane %v269, %v328
    %331 = vbcast.lane.b32.xlu0 %v329, 256
    %v332 = vpop.permute.xlu0 %331
    %s334 = sor.u32 256, 8
    %335 = vbcast.lane.b32.xlu0 %v329, %s334
    %v336 = vpop.permute.xlu0 %335
    %v337 = vlaneseq
    %v338 = vshrl.u32 %v337, 7
    %v339 = vsub.s32 6, %v338
    %v340 = vrot.slane %v269, %v339
    %342 = vbcast.lane.b32.xlu0 %v340, 256
    %v343 = vpop.permute.xlu0 %342
    %s345 = sor.u32 256, 8
    %346 = vbcast.lane.b32.xlu0 %v340, %s345
    %v347 = vpop.permute.xlu0 %346
    %v348 = vlaneseq
    %v349 = vshrl.u32 %v348, 7
    %v350 = vsub.s32 7, %v349
    %v351 = vrot.slane %v269, %v350
    %353 = vbcast.lane.b32.xlu0 %v351, 256
    %v354 = vpop.permute.xlu0 %353
    %s356 = sor.u32 256, 8
    %357 = vbcast.lane.b32.xlu0 %v351, %s356
    %v358 = vpop.permute.xlu0 %357
    %v359 = vlaneseq
    %v360 = vshrl.u32 %v359, 7
    %v361 = vsub.s32 0, %v360
    %v362 = vrot.slane %v270, %v361
    %364 = vbcast.lane.b32.xlu0 %v362, 256
    %v365 = vpop.permute.xlu0 %364
    %s367 = sor.u32 256, 8
    %368 = vbcast.lane.b32.xlu0 %v362, %s367
    %v369 = vpop.permute.xlu0 %368
    %v370 = vlaneseq
    %v371 = vshrl.u32 %v370, 7
    %v372 = vsub.s32 1, %v371
    %v373 = vrot.slane %v270, %v372
    %375 = vbcast.lane.b32.xlu0 %v373, 256
    %v376 = vpop.permute.xlu0 %375
    %s378 = sor.u32 256, 8
    %379 = vbcast.lane.b32.xlu0 %v373, %s378
    %v380 = vpop.permute.xlu0 %379
    %v381 = vmul.f32 %v249, %v277
    %v382 = vmul.f32 %v250, %v281
    %v383 = vmul.f32 %v251, %v288
    %v384 = vmul.f32 %v252, %v292
    %v385 = vmul.f32 %v253, %v299
    %v386 = vmul.f32 %v254, %v303
    %v387 = vmul.f32 %v255, %v310
    %v388 = vmul.f32 %v256, %v314
    %v389 = vmul.f32 %v257, %v321
    %v390 = vmul.f32 %v258, %v325
    %v391 = vmul.f32 %v259, %v332
    %v392 = vmul.f32 %v260, %v336
    %v393 = vmul.f32 %v261, %v343
    %v394 = vmul.f32 %v262, %v347
    %v395 = vmul.f32 %v263, %v354
    %v396 = vmul.f32 %v264, %v358
    %v397 = vmul.f32 %v265, %v365
    %v398 = vmul.f32 %v266, %v369
    %v399 = vmul.f32 %v267, %v376
    %v400 = vmul.f32 %v268, %v380
    %401 = vst.msk [vmem:[#allocation2] sm:$0xff] %vm105, %v381
    %402 = vst.msk [vmem:[#allocation2 + $0x8] sm:$0xff] %vm105, %v382
    %403 = vst.msk [vmem:[#allocation2 + $0x10] sm:$0xff] %vm105, %v383
    %404 = vst.msk [vmem:[#allocation2 + $0x18] sm:$0xff] %vm105, %v384
    %405 = vst.msk [vmem:[#allocation2 + $0x20] sm:$0xff] %vm105, %v385
    %406 = vst.msk [vmem:[#allocation2 + $0x28] sm:$0xff] %vm105, %v386
    %407 = vst.msk [vmem:[#allocation2 + $0x30] sm:$0xff] %vm105, %v387
    %408 = vst.msk [vmem:[#allocation2 + $0x38] sm:$0xff] %vm105, %v388
    %409 = vst.msk [vmem:[#allocation2 + $0x40] sm:$0xff] %vm105, %v389
    %410 = vst.msk [vmem:[#allocation2 + $0x48] sm:$0xff] %vm105, %v390
    %411 = vst.msk [vmem:[#allocation2 + $0x50] sm:$0xff] %vm105, %v391
    %412 = vst.msk [vmem:[#allocation2 + $0x58] sm:$0xff] %vm105, %v392
    %413 = vst.msk [vmem:[#allocation2 + $0x60] sm:$0xff] %vm105, %v393
    %414 = vst.msk [vmem:[#allocation2 + $0x68] sm:$0xff] %vm105, %v394
    %415 = vst.msk [vmem:[#allocation2 + $0x70] sm:$0xff] %vm105, %v395
    %416 = vst.msk [vmem:[#allocation2 + $0x78] sm:$0xff] %vm105, %v396
    %417 = vst.msk [vmem:[#allocation2 + $0x80] sm:$0xff] %vm105, %v397
    %418 = vst.msk [vmem:[#allocation2 + $0x88] sm:$0xff] %vm105, %v398
    %419 = vst.msk [vmem:[#allocation2 + $0x90] sm:$0xff] %vm105, %v399
    %420 = vst.msk [vmem:[#allocation2 + $0x98] sm:$0xff] %vm105, %v400
    %vm421 = vcmask 130048
    %v422 = vsel %vm421, %v269, 0.0
    %423 = vadd.xlane.f32.xlu0 %v422
    %v424 = vpop.xlane.xlu0 %423
    %vm425 = vcmask 123904
    %v426 = vsel %vm425, %v270, 0.0
    %427 = vadd.xlane.f32.xlu0 %v426
    %v428 = vpop.xlane.xlu0 %427
    %v429 = vmax.f32 %v424, 1.0
    %v430 = vmax.f32 %v428, 1.0
    %v431 = vsel %vm105, %v381, 0.0
    %v432 = vsel %vm105, %v382, 0.0
    %v433 = vadd.f32 %v431, %v432
    %v434 = vrot.slane %v433, 4
    %v435 = vadd.f32 %v433, %v434
    %v436 = vrot.slane %v435, 2
    %v437 = vadd.f32 %v435, %v436
    %v438 = vrot.slane %v437, 1
    %v439 = vadd.f32 %v437, %v438
    %v440 = vsel %vm105, %v383, 0.0
    %v441 = vsel %vm105, %v384, 0.0
    %v442 = vadd.f32 %v440, %v441
    %v443 = vrot.slane %v442, 4
    %v444 = vadd.f32 %v442, %v443
    %v445 = vrot.slane %v444, 2
    %v446 = vadd.f32 %v444, %v445
    %v447 = vrot.slane %v446, 1
    %v448 = vadd.f32 %v446, %v447
    %v449 = vsel %vm105, %v385, 0.0
    %v450 = vsel %vm105, %v386, 0.0
    %v451 = vadd.f32 %v449, %v450
    %v452 = vrot.slane %v451, 4
    %v453 = vadd.f32 %v451, %v452
    %v454 = vrot.slane %v453, 2
    %v455 = vadd.f32 %v453, %v454
    %v456 = vrot.slane %v455, 1
    %v457 = vadd.f32 %v455, %v456
    %v458 = vsel %vm105, %v387, 0.0
    %v459 = vsel %vm105, %v388, 0.0
    %v460 = vadd.f32 %v458, %v459
    %v461 = vrot.slane %v460, 4
    %v462 = vadd.f32 %v460, %v461
    %v463 = vrot.slane %v462, 2
    %v464 = vadd.f32 %v462, %v463
    %v465 = vrot.slane %v464, 1
    %v466 = vadd.f32 %v464, %v465
    %v467 = vsel %vm105, %v389, 0.0
    %v468 = vsel %vm105, %v390, 0.0
    %v469 = vadd.f32 %v467, %v468
    %v470 = vrot.slane %v469, 4
    %v471 = vadd.f32 %v469, %v470
    %v472 = vrot.slane %v471, 2
    %v473 = vadd.f32 %v471, %v472
    %v474 = vrot.slane %v473, 1
    %v475 = vadd.f32 %v473, %v474
    %v476 = vsel %vm105, %v391, 0.0
    %v477 = vsel %vm105, %v392, 0.0
    %v478 = vadd.f32 %v476, %v477
    %v479 = vrot.slane %v478, 4
    %v480 = vadd.f32 %v478, %v479
    %v481 = vrot.slane %v480, 2
    %v482 = vadd.f32 %v480, %v481
    %v483 = vrot.slane %v482, 1
    %v484 = vadd.f32 %v482, %v483
    %v485 = vsel %vm105, %v393, 0.0
    %v486 = vsel %vm105, %v394, 0.0
    %v487 = vadd.f32 %v485, %v486
    %v488 = vrot.slane %v487, 4
    %v489 = vadd.f32 %v487, %v488
    %v490 = vrot.slane %v489, 2
    %v491 = vadd.f32 %v489, %v490
    %v492 = vrot.slane %v491, 1
    %v493 = vadd.f32 %v491, %v492
    %v494 = vsel %vm105, %v395, 0.0
    %v495 = vsel %vm105, %v396, 0.0
    %v496 = vadd.f32 %v494, %v495
    %v497 = vrot.slane %v496, 4
    %v498 = vadd.f32 %v496, %v497
    %v499 = vrot.slane %v498, 2
    %v500 = vadd.f32 %v498, %v499
    %v501 = vrot.slane %v500, 1
    %v502 = vadd.f32 %v500, %v501
    %v503 = vsel %vm105, %v397, 0.0
    %v504 = vsel %vm105, %v398, 0.0
    %v505 = vadd.f32 %v503, %v504
    %v506 = vrot.slane %v505, 4
    %v507 = vadd.f32 %v505, %v506
    %v508 = vrot.slane %v507, 2
    %v509 = vadd.f32 %v507, %v508
    %v510 = vrot.slane %v509, 1
    %v511 = vadd.f32 %v509, %v510
    %v512 = vsel %vm105, %v399, 0.0
    %v513 = vsel %vm105, %v400, 0.0
    %v514 = vadd.f32 %v512, %v513
    %v515 = vrot.slane %v514, 4
    %v516 = vadd.f32 %v514, %v515
    %v517 = vrot.slane %v516, 2
    %v518 = vadd.f32 %v516, %v517
    %v519 = vrot.slane %v518, 1
    %v520 = vadd.f32 %v518, %v519
    %v523 = vrot.slane %v429, 1
    %v524 = vrot.slane %v429, 2
    %v525 = vrot.slane %v429, 3
    %v526 = vrot.slane %v429, 4
    %v527 = vrot.slane %v429, 5
    %v528 = vrot.slane %v429, 6
    %v529 = vrot.slane %v429, 7
    %v530 = vrot.slane %v430, 1
    %v541 = vrcp.pop %v429
    %v542 = vmul.f32 %v439, %v541
    %v543 = vrcp.pop %v523
    %v544 = vmul.f32 %v448, %v543
    %v545 = vrcp.pop %v524
    %v546 = vmul.f32 %v457, %v545
    %v547 = vrcp.pop %v525
    %v548 = vmul.f32 %v466, %v547
    %v549 = vrcp.pop %v526
    %v550 = vmul.f32 %v475, %v549
    %v551 = vrcp.pop %v527
    %v552 = vmul.f32 %v484, %v551
    %v553 = vrcp.pop %v528
    %v554 = vmul.f32 %v493, %v553
    %v555 = vrcp.pop %v529
    %v556 = vmul.f32 %v502, %v555
    %v557 = vrcp.pop %v430
    %v558 = vmul.f32 %v511, %v557
    %v559 = vrcp.pop %v530
    %v560 = vmul.f32 %v520, %v559
    %v561 = vpack.c.bf16 %v542, %v542
    %v562 = vpack.c.bf16 %v544, %v544
    %v563 = vpack.c.bf16 %v546, %v546
    %v564 = vpack.c.bf16 %v548, %v548
    %v565 = vpack.c.bf16 %v550, %v550
    %v566 = vpack.c.bf16 %v552, %v552
    %v567 = vpack.c.bf16 %v554, %v554
    %v568 = vpack.c.bf16 %v556, %v556
    %v569 = vpack.c.bf16 %v558, %v558
    %v570 = vpack.c.bf16 %v560, %v560
    %v581 = vunpack.c.l.b16 %v561
    %v582 = vunpack.c.l.b16 %v562
    %v583 = vunpack.c.l.b16 %v563
    %v584 = vunpack.c.l.b16 %v564
    %v585 = vunpack.c.l.b16 %v565
    %v586 = vunpack.c.l.b16 %v566
    %v587 = vunpack.c.l.b16 %v567
    %v588 = vunpack.c.l.b16 %v568
    %v589 = vunpack.c.l.b16 %v569
    %v590 = vunpack.c.l.b16 %v570
    %v591 = vpack.c.b16 %v581, %v581
    %v592 = vpack.c.b16 %v582, %v582
    %v593 = vpack.c.b16 %v583, %v583
    %v594 = vpack.c.b16 %v584, %v584
    %v595 = vpack.c.b16 %v585, %v585
    %v596 = vpack.c.b16 %v586, %v586
    %v597 = vpack.c.b16 %v587, %v587
    %v598 = vpack.c.b16 %v588, %v588
    %v599 = vpack.c.b16 %v589, %v589
    %v600 = vpack.c.b16 %v590, %v590
    %v601 = vunpack.c.l.b16 %v591
    %v602 = vunpack.c.l.b16 %v592
    %v603 = vunpack.c.l.b16 %v593
    %v604 = vunpack.c.l.b16 %v594
    %v605 = vunpack.c.l.b16 %v595
    %v606 = vunpack.c.l.b16 %v596
    %v607 = vunpack.c.l.b16 %v597
    %v608 = vunpack.c.l.b16 %v598
    %v609 = vunpack.c.l.b16 %v599
    %v610 = vunpack.c.l.b16 %v600
    %v611 = vrot.slane %v602, 7
    %vm612 = vcmask 1041409
    %v613 = vsel %vm612, %v611, %v601
    %v614 = vrot.slane %v603, 6
    %vm615 = vcmask 1042434
    %v616 = vsel %vm615, %v614, %v613
    %v617 = vrot.slane %v604, 5
    %vm618 = vcmask 1043459
    %v619 = vsel %vm618, %v617, %v616
    %v620 = vrot.slane %v605, 4
    %vm621 = vcmask 1044484
    %v622 = vsel %vm621, %v620, %v619
    %v623 = vrot.slane %v606, 3
    %vm624 = vcmask 1045509
    %v625 = vsel %vm624, %v623, %v622
    %v626 = vrot.slane %v607, 2
    %vm627 = vcmask 1046534
    %v628 = vsel %vm627, %v626, %v625
    %v629 = vrot.slane %v608, 1
    %vm630 = vcmask 1047559
    %v631 = vsel %vm630, %v629, %v628
    %v632 = vrot.slane %v610, 7
    %v633 = vsel %vm612, %v632, %v609
    %v634 = vpack.c.b16 %v631, %v631
    %v635 = vpack.c.b16 %v633, %v633
    %vm638 = vcmask 257024
    %639 = vst.msk [vmem:[#allocation4] sm:$0xf] %vm638, %v634
    %vm640 = vcmask 253952
    %641 = vst.msk [vmem:[#allocation4 + $0x4] sm:$0x1] %vm640, %v635
    // Predicated region
    $region14: #{tpu_custom_call.1} parent=1 // pred_check
      _
    $region15: #{tpu_custom_call.1} parent=1 // pred_check_branch
      %643 = sbr.rel (0) target = $region17
    $region16: #{tpu_custom_call.1} parent=1 // pred_region
      %s645 = ssub.s32 2560, 2560
      %646 = vsyncadd [#allocation3], %s645
      %s647 = sshll.u32 [#allocation2], 4
      %s648 = int_to_ptr.vmem [resolvable:$true] %s647
      %653 = dma.vmem_to_hbm [thread:$0]  %s648, 2560, %s3, [#allocation3], 128, 128, 8
    $region17: #{tpu_custom_call.1} parent=1 // pred_fallthru
      _
    // Predicated region
    $region18: #{tpu_custom_call.1} parent=1 // pred_check
      _
    $region19: #{tpu_custom_call.1} parent=1 // pred_check_branch
      %655 = sbr.rel (0) target = $region21
    $region20: #{tpu_custom_call.1} parent=1 // pred_region
      %s657 = ssub.s32 128, 128
      %658 = vsyncadd [#allocation5], %s657
      %s659 = sshll.u32 [#allocation4], 4
      %s660 = int_to_ptr.vmem [resolvable:$true] %s659
      %665 = dma.vmem_to_hbm [thread:$0]  %s660, 128, %s4, [#allocation5], 64, 64, 4
    $region21: #{tpu_custom_call.1} parent=1 // pred_fallthru
      _
    // Predicated region
    $region22: #{tpu_custom_call.1} parent=1 // pred_check
      _
    $region23: #{tpu_custom_call.1} parent=1 // pred_check_branch
      %667 = sbr.rel (0) target = $region25
    $region24: #{tpu_custom_call.1} parent=1 // pred_region
      %668 = dma.done [#allocation3], 2560
    $region25: #{tpu_custom_call.1} parent=1 // pred_fallthru
      _
    // Predicated region
    $region26: #{tpu_custom_call.1} parent=1 // pred_check
      _
    $region27: #{tpu_custom_call.1} parent=1 // pred_check_branch
      %670 = sbr.rel (0) target = $region29
    $region28: #{tpu_custom_call.1} parent=1 // pred_region
      %671 = dma.done [#allocation5], 128
    $region29: #{tpu_custom_call.1} parent=1 // pred_fallthru
      _
    %672 = vsyncpa [#allocation3], 1
    %673 = vsyncpa [#allocation5], 1

</llo_original>
